<compile_context>
chip_gen: v7x
topology: tpu7x:2x2x1
jax: 0.10.0
libtpu: 0.0.40
codegen_flags: <defaults>
</compile_context>

<pallas_src>
import functools

import jax
import jax.numpy as jnp
from jax import lax
from jax.experimental import pallas as pl
from jax.experimental.pallas import tpu as pltpu


def _max_conf_kernel(post_ref, out_ref, max_sc, *, n, tn, conf, mask_tail):
    """output_type in ('class', 'all'): only the global max class score matters."""
    pid = pl.program_id(0)

    @pl.when(pid == 0)
    def _init():
        max_sc[0] = jnp.float32(-jnp.inf)

    row_max = jnp.max(post_ref[...], axis=1, keepdims=True)            # (tn, 1)
    if mask_tail:                                                      # ragged last tile
        row_ids = pid * tn + lax.broadcasted_iota(jnp.int32, (tn, 1), 0)
        row_max = jnp.where(row_ids < n, row_max, -jnp.inf)
    tile_max = jnp.max(row_max)

    max_sc[0] = jnp.maximum(max_sc[0], tile_max)

    @pl.when(pid == pl.num_programs(0) - 1)
    def _finalize():
        m = max_sc[0]
        out_ref[0] = jnp.where(m < conf, jnp.float32(0.0), m)


def _box_kernel(post_ref, boxes_ref, out_ref, max_sc, box_sc, *,
                n, tn, conf, mask_tail):
    """output_type == 'box': carry (running max_conf, box-sum at its argmax row)."""
    pid = pl.program_id(0)

    @pl.when(pid == 0)
    def _init():
        max_sc[0] = jnp.float32(-jnp.inf)
        box_sc[0] = jnp.float32(0.0)

    row_ids = pid * tn + lax.broadcasted_iota(jnp.int32, (tn, 1), 0)   # global det ids
    row_max = jnp.max(post_ref[...], axis=1, keepdims=True)            # (tn, 1)
    if mask_tail:
        row_max = jnp.where(row_ids < n, row_max, -jnp.inf)
    tile_max = jnp.max(row_max)

    # first (lowest global id) row in this tile reaching tile_max -> torch tie-break
    sentinel = jnp.int32(2147483647)
    sel = jnp.min(jnp.where(row_max == tile_max, row_ids, sentinel))

    # sum of that row's 4 box coords; only (tn,1)-shaped intermediates
    row_box = jnp.sum(boxes_ref[...], axis=1, keepdims=True)           # (tn, 1)
    tile_box = jnp.sum(jnp.where(row_ids == sel, row_box, jnp.float32(0.0)))

    # merge with running best; strict '>' keeps the earliest tile on exact ties
    better = tile_max > max_sc[0]
    max_sc[0] = jnp.where(better, tile_max, max_sc[0])
    box_sc[0] = jnp.where(better, tile_box, box_sc[0])

    @pl.when(pid == pl.num_programs(0) - 1)
    def _finalize():
        out_ref[0] = jnp.where(max_sc[0] < conf, jnp.float32(0.0), box_sc[0])


def _choose_tile_rows(n, c, include_boxes):
    """Largest sensible row-tile that stays well under the per-generation VMEM."""
    if n <= 1024:
        return n                     # single block == full dims, no (8,128) constraint
    try:
        vmem_bytes = int(pltpu.get_tpu_info().vmem_capacity_bytes)
    except Exception:
        vmem_bytes = 64 * 1024 * 1024          # v7x per-core lower bound
    c_lanes = ((c + 127) // 128) * 128
    lanes = c_lanes + (128 if include_boxes else 0)
    per_row_bytes = lanes * 4 * 2              # f32, double-buffered by the pipeline
    rows = (vmem_bytes // 8) // max(per_row_bytes, 1)
    rows = max(512, min(rows, 4096))
    rows = min(rows, n)
    return max(8, (rows // 8) * 8)             # multiple of 8 sublanes


def yolov8_target_forward(post_result, pre_post_boxes, *, output_type="class",
                          conf=0.25, ratio=0.02, target_class=5, _tile_rows=None):
    # `ratio` / `target_class` are stored by the torch module but unused in forward.
    del ratio, target_class
    n = post_result.shape[0]
    if n == 0:                                 # torch: post_result.size(0) == 0 -> 0
        return jnp.float32(0.0)
    c = post_result.shape[1]

    want_box = output_type == "box"
    want_class = output_type in ("class", "all")
    if not (want_box or want_class):           # torch: empty result list -> 0
        return jnp.float32(0.0)

    post = post_result.astype(jnp.float32)
    tn = int(_tile_rows) if _tile_rows is not None else _choose_tile_rows(n, c, want_box)
    grid = (pl.cdiv(n, tn),)
    mask_tail = (n % tn) != 0

    post_spec = pl.BlockSpec((tn, c), lambda i: (i, 0))
    out_spec = pl.BlockSpec(memory_space=pltpu.MemorySpace.SMEM)
    # N axis carries the running reduction state -> 'arbitrary'.
    # TODO(synk): per-core parallel N split + tiny combine epilogue for v7x megacore.
    cparams = pltpu.CompilerParams(dimension_semantics=("arbitrary",))

    if want_class:
        kernel = functools.partial(_max_conf_kernel, n=n, tn=tn,
                                   conf=float(conf), mask_tail=mask_tail)
        out = pl.pallas_call(
            kernel,
            out_shape=jax.ShapeDtypeStruct((1,), jnp.float32),
            grid=grid,
            in_specs=[post_spec],
            out_specs=out_spec,
            scratch_shapes=[pltpu.SMEM((1,), jnp.float32)],
            compiler_params=cparams,
        )(post)
    else:  # 'box'
        boxes = pre_post_boxes.astype(jnp.float32)
        kernel = functools.partial(_box_kernel, n=n, tn=tn,
                                   conf=float(conf), mask_tail=mask_tail)
        out = pl.pallas_call(
            kernel,
            out_shape=jax.ShapeDtypeStruct((1,), jnp.float32),
            grid=grid,
            in_specs=[post_spec, pl.BlockSpec((tn, 4), lambda i: (i, 0))],
            out_specs=out_spec,
            scratch_shapes=[pltpu.SMEM((1,), jnp.float32),
                            pltpu.SMEM((1,), jnp.float32)],
            compiler_params=cparams,
        )(post, boxes)
    return out[0]


def _reference_forward(post, boxes, output_type, conf):
    # pure-numpy reimplementation of the torch forward, for verification
    import numpy as np
    post = np.asarray(post, dtype=np.float32)
    boxes = np.asarray(boxes, dtype=np.float32)
    if post.shape[0] == 0:
        return 0.0
    max_idx = int(post.max(axis=1).argmax())
    max_conf = float(post[max_idx].max())
    if max_conf < conf:
        return 0.0
    if output_type == "class" or output_type == "all":
        return max_conf
    elif output_type == "box":
        return float(boxes[max_idx, :4].sum())
    return 0.0


if __name__ == "__main__":
    key = jax.random.PRNGKey(0)
    k1, k2, k3, k4 = jax.random.split(key, 4)

    ok = True

    # small single-tile case: 6 detections, 80 classes
    N, C = 6, 80
    post = jax.random.uniform(k1, (N, C), dtype=jnp.float32)
    boxes = jax.random.uniform(k2, (N, 4), dtype=jnp.float32) * 16.0
    for otype in ("class", "box", "all"):
        got = float(jax.block_until_ready(
            yolov8_target_forward(post, boxes, output_type=otype, conf=0.25)))
        want = _reference_forward(post, boxes, otype, 0.25)
        if abs(got - want) > 1e-4 * max(1.0, abs(want)):
            ok = False
            print(f"MISMATCH type={otype}: got={got} want={want}")

    # multi-tile + ragged last tile: 20 detections, forced 8-row tiles -> grid=3
    N2, C2 = 20, 80
    post2 = jax.random.uniform(k3, (N2, C2), dtype=jnp.float32)
    boxes2 = jax.random.uniform(k4, (N2, 4), dtype=jnp.float32) * 16.0
    for otype in ("class", "box"):
        got = float(jax.block_until_ready(
            yolov8_target_forward(post2, boxes2, output_type=otype, conf=0.25,
                                  _tile_rows=8)))
        want = _reference_forward(post2, boxes2, otype, 0.25)
        if abs(got - want) > 1e-4 * max(1.0, abs(want)):
            ok = False
            print(f"MISMATCH tiled type={otype}: got={got} want={want}")

    # conf-threshold reject path (everything below conf -> 0)
    got0 = float(jax.block_until_ready(
        yolov8_target_forward(post * 0.01, boxes, output_type="class", conf=0.25)))
    if abs(got0) > 1e-6:
        ok = False
        print(f"MISMATCH reject path: got={got0} want=0.0")

    if ok:
        print("KERNEL_OK")
</pallas_src>

<mosaic_0001>
module attributes {stable_mosaic.version = 11 : i64} {
  func.func @_max_conf_kernel(%arg0: i32, %arg1: memref<6x80xf32, #tpu.memory_space<vmem>>, %arg2: memref<1xf32, #tpu.memory_space<smem>>, %arg3: memref<1xf32, #tpu.memory_space<smem>>) attributes {dimension_semantics = [#tpu.dimension_semantics<arbitrary>], iteration_bounds = array<i64: 1>, scalar_prefetch = 0 : i64, scratch_operands = 1 : i64, tpu.core_type = #tpu.core_type<tc>, window_params = [{transform_indices = @transform_0, window_bounds = array<i64: 6, 80>}, {transform_indices = @transform_1, window_bounds = array<i64: 1>}]} {
    %c0_i32 = arith.constant 0 : i32
    %0 = arith.cmpi eq, %arg0, %c0_i32 : i32
    %1 = arith.extui %0 : i1 to i32
    %c0_i32_0 = arith.constant 0 : i32
    %2 = arith.cmpi ne, %1, %c0_i32_0 : i32
    scf.if %2 {
      %cst_7 = arith.constant 0xFF800000 : f32
      %c0_8 = arith.constant 0 : index
      %16 = memref.load %arg3[%c0_8] : memref<1xf32, #tpu.memory_space<smem>>
      memref.store %cst_7, %arg3[%c0_8] : memref<1xf32, #tpu.memory_space<smem>>
    } else {
    }
    %c0 = arith.constant 0 : index
    %c0_1 = arith.constant 0 : index
    %3 = vector.load %arg1[%c0, %c0_1] : memref<6x80xf32, #tpu.memory_space<vmem>>, vector<6x80xf32>
    %cst = arith.constant dense<0xFF800000> : vector<6xf32>
    %4 = vector.multi_reduction <maximumf>, %3, %cst [1] : vector<6x80xf32> to vector<6xf32>
    %5 = vector.shape_cast %4 : vector<6xf32> to vector<6x1xf32>
    %6 = vector.shape_cast %5 : vector<6x1xf32> to vector<1x6x1xf32>
    %cst_2 = arith.constant dense<0xFF800000> : vector<1xf32>
    %7 = vector.multi_reduction <maximumf>, %6, %cst_2 [1, 2] : vector<1x6x1xf32> to vector<1xf32>
    %8 = vector.shape_cast %7 : vector<1xf32> to vector<1x1x1xf32>
    %9 = vector.extract %8[0, 0, 0] : f32 from vector<1x1x1xf32>
    %c0_3 = arith.constant 0 : index
    %10 = memref.load %arg3[%c0_3] : memref<1xf32, #tpu.memory_space<smem>>
    %11 = arith.maximumf %10, %9 : f32
    %c0_4 = arith.constant 0 : index
    %12 = memref.load %arg3[%c0_4] : memref<1xf32, #tpu.memory_space<smem>>
    memref.store %11, %arg3[%c0_4] : memref<1xf32, #tpu.memory_space<smem>>
    %c0_i32_5 = arith.constant 0 : i32
    %13 = arith.cmpi eq, %arg0, %c0_i32_5 : i32
    %14 = arith.extui %13 : i1 to i32
    %c0_i32_6 = arith.constant 0 : i32
    %15 = arith.cmpi ne, %14, %c0_i32_6 : i32
    scf.if %15 {
      %c0_7 = arith.constant 0 : index
      %16 = memref.load %arg3[%c0_7] : memref<1xf32, #tpu.memory_space<smem>>
      %cst_8 = arith.constant 2.500000e-01 : f32
      %17 = arith.cmpf olt, %16, %cst_8 : f32
      %cst_9 = arith.constant 0.000000e+00 : f32
      %18 = arith.select %17, %cst_9, %16 : f32
      %c0_10 = arith.constant 0 : index
      %19 = memref.load %arg2[%c0_10] : memref<1xf32, #tpu.memory_space<smem>>
      memref.store %18, %arg2[%c0_10] : memref<1xf32, #tpu.memory_space<smem>>
    } else {
    }
    return
  }
  func.func @transform_0(%arg0: i32) -> (i32, i32) {
    %c0_i32 = arith.constant 0 : i32
    %c0_i32_0 = arith.constant 0 : i32
    return %arg0, %c0_i32 : i32, i32
  }
  func.func @transform_1(%arg0: i32) -> i32 {
    %c0_i32 = arith.constant 0 : i32
    %c0_i32_0 = arith.constant 0 : i32
    return %c0_i32 : i32
  }
}

</mosaic_0001>

<llo_original>
// kernel: tpu_custom_call.1
$region0: #{tpu_custom_call.1}
  #allocation0 [shape = 'u32[]', space=smem, size = 0x4, offset = 0x4, fixed_abs, tag = 'smem constant byte address 0x4 - core index']
  #allocation1 [shape = 'u32[144,128]{1,0:T(1,128)}', space=vmem, size = 0x12000, scoped, tag = 'internal scratch']
  #allocation2 [shape = 'f32[1]{0:T(128)}', space=smem, size = 0x200, scoped, tag = 'scratch operand']
  %s0 = inlined_call_operand.hbm [shape: f32[6,80], index: 0, kind: input, shape index: {}]
  %s1 = inlined_call_operand.hbm [shape: f32[1], index: 1, kind: output, shape index: {}]
  %s2 = sld [smem:[#allocation0]]
  $region26: #{tpu_custom_call.1} parent=0
    _
  %s4 = ssub.s32 1, %s2
  %s5 = scalar_select 0, %s4, %s2
  $region1: #{tpu_custom_call.1} parent=0
    #allocation3 [shape = 'u8[4096]{0}', space=vmem, size = 0x1000, scoped, tag = 'input window, operand 0, single buffered']
    #allocation4 [shape = 's32[1]{0}', space=sflag, size = 0x4, scoped, tag = 'scoped memory for tpu_custom_call.1']
    #allocation5 [shape = 's32[1]{0}', space=sflag, size = 0x4, scoped, tag = 'scoped memory for tpu_custom_call.1']
    #allocation6 [shape = 'u8[512]{0}', space=smem, size = 0x200, scoped, tag = 'output window, operand 0, single buffered']
    %6 = vsyncpa [#allocation4], 0
    %7 = vsyncpa [#allocation5], 0
    // Predicated region
    $region2: #{tpu_custom_call.1} parent=1 // pred_check
      _
    $region3: #{tpu_custom_call.1} parent=1 // pred_check_branch
      %9 = sbr.rel (0) target = $region5
    $region4: #{tpu_custom_call.1} parent=1 // pred_region
      %s11 = ssub.s32 128, 128
      %12 = vsyncadd [#allocation4], %s11
      %s14 = sshll.u32 [#allocation3], 4
      %s15 = int_to_ptr.vmem [resolvable:$true] %s14
      %17 = dma.hbm_to_vmem [thread:$0]  %s0, 128, %s15, [#allocation4]
    $region5: #{tpu_custom_call.1} parent=1 // pred_fallthru
      _
    // Predicated region
    $region6: #{tpu_custom_call.1} parent=1 // pred_check
      _
    $region7: #{tpu_custom_call.1} parent=1 // pred_check_branch
      %19 = sbr.rel (0) target = $region9
    $region8: #{tpu_custom_call.1} parent=1 // pred_region
      %20 = dma.done [#allocation4], 128
    $region9: #{tpu_custom_call.1} parent=1 // pred_fallthru
      _
    %p21 = scmp.eq.s32.totalorder 0, 0
    // Predicated region
    $region10: #{tpu_custom_call.1} parent=1 // pred_check
      %p22 = pneg %p21
    $region11: #{tpu_custom_call.1} parent=1 // pred_check_branch
      %24 = sbr.rel (%p22) target = $region13
    $region12: #{tpu_custom_call.1} parent=1 // pred_region
      %s25 = scalar_lea.smem [#allocation2], 0
      %26 = sst [smem:[%s25]] -inf
    $region13: #{tpu_custom_call.1} parent=1 // pred_fallthru
      _
    %v27 = vld [vmem:[#allocation3] sm:$0x3f]
    %vm28 = vcmask 652288
    %v29 = vsel %vm28, %v27, -inf
    %30 = vmax.xlane.f32.xlu0 %v29
    %v31 = vpop.xlane.xlu0 %30
    %vm32 = vcmask 1045504
    %v33 = vsel %vm32, %v31, -inf
    %v34 = vrot.slane %v33, 4
    %v35 = vmax.f32 %v33, %v34
    %v36 = vrot.slane %v35, 2
    %v37 = vmax.f32 %v35, %v36
    %v38 = vrot.slane %v37, 1
    %v39 = vmax.f32 %v37, %v38
    %s40 = vtos %v39
    %s41 = sld [smem:[#allocation2]]
    %s42 = smax.f32 %s41, %s40
    %s43 = scalar_lea.smem [#allocation2], 0
    %44 = sst [smem:[%s43]] %s42
    // Predicated region
    $region14: #{tpu_custom_call.1} parent=1 // pred_check
      %p45 = pneg %p21
    $region15: #{tpu_custom_call.1} parent=1 // pred_check_branch
      %47 = sbr.rel (%p45) target = $region17
    $region16: #{tpu_custom_call.1} parent=1 // pred_region
      %s48 = sld [smem:[#allocation2]]
      %p49 = scmp.lt.f32.partialorder %s48, 0.25
      %s50 = scalar_select %p49, 0.0, %s48
      %s51 = scalar_lea.smem [#allocation6], 0
      %52 = sst [smem:[%s51]] %s50
    $region17: #{tpu_custom_call.1} parent=1 // pred_fallthru
      _
    // Predicated region
    $region18: #{tpu_custom_call.1} parent=1 // pred_check
      _
    $region19: #{tpu_custom_call.1} parent=1 // pred_check_branch
      %54 = sbr.rel (0) target = $region21
    $region20: #{tpu_custom_call.1} parent=1 // pred_region
      %s56 = ssub.s32 16, 16
      %57 = vsyncadd [#allocation5], %s56
      %60 = dma.smem_to_hbm [#allocation6], 16, %s1, [#allocation5]
    $region21: #{tpu_custom_call.1} parent=1 // pred_fallthru
      _
    // Predicated region
    $region22: #{tpu_custom_call.1} parent=1 // pred_check
      _
    $region23: #{tpu_custom_call.1} parent=1 // pred_check_branch
      %62 = sbr.rel (0) target = $region25
    $region24: #{tpu_custom_call.1} parent=1 // pred_region
      %63 = dma.done [#allocation5], 16
    $region25: #{tpu_custom_call.1} parent=1 // pred_fallthru
      _
    %64 = sfence
    %65 = vsyncpa [#allocation4], 1
    %66 = vsyncpa [#allocation5], 1

</llo_original>
